<compile_context>
chip_gen: v6e
topology: v6e:2x2x1
jax: 0.10.0
libtpu: 0.0.40
codegen_flags: <defaults>
</compile_context>

<pallas_src>
import jax
import jax.numpy as jnp
from jax.experimental import pallas as pl
from jax.experimental.pallas import tpu as pltpu


def _round_up(x, m):
    return ((x + m - 1) // m) * m


def _cdiv(a, b):
    return -(-a // b)


def _softplus(h):
    # torch.nn.Softplus(beta=1, threshold=20): identity above the threshold.
    return jnp.where(h > 20.0, h, jnp.log1p(jnp.exp(jnp.minimum(h, 20.0))))


def _net_map_kernel(params_ref, x_ref, o_ref):
    """o = fc_out(softplus(fc1(x))) on a sublane/lane-dense batch tile.

    params_ref: (11,) f32 in SMEM, layout:
        [w1[0,0], w1[0,1], w1[1,0], w1[1,1], w1[2,0], w1[2,1],
         b1[0], b1[1], w2[0,0], w2[1,0], b2[0]]
    x_ref: (3, TR, LANES) f32 VMEM  (feature planes; batch packed on sublanes x lanes)
    o_ref: (TR, LANES)    f32 VMEM  (fully dense output stores)
    """
    # Full-occupancy (TR, LANES) feature planes.
    x0 = x_ref[0]
    x1 = x_ref[1]
    x2 = x_ref[2]

    # Read the 11 scalars into locals once per grid step.
    w00 = params_ref[0]
    w01 = params_ref[1]
    w10 = params_ref[2]
    w11 = params_ref[3]
    w20 = params_ref[4]
    w21 = params_ref[5]
    b0 = params_ref[6]
    b1 = params_ref[7]
    v0 = params_ref[8]
    v1 = params_ref[9]
    c = params_ref[10]

    # Hidden layer: pure VPU FMAs.
    h0 = w00 * x0 + w10 * x1 + w20 * x2 + b0
    h1 = w01 * x0 + w11 * x1 + w21 * x2 + b1

    # Softplus on the EUP (2 transcendental pairs per element).
    s0 = _softplus(h0)
    s1 = _softplus(h1)

    # Output layer.
    o_ref[...] = v0 * s0 + v1 * s1 + c


def init_params(key):
    """Deterministic init matching PyTorch Linear shapes (stored transposed: (in, out))."""
    k1, k2, k3, k4 = jax.random.split(key, 4)
    bound1 = 1.0 / jnp.sqrt(3.0)  # fan_in = 3
    bound2 = 1.0 / jnp.sqrt(2.0)  # fan_in = 2
    w1 = jax.random.uniform(k1, (3, 2), jnp.float32, -bound1, bound1)
    b1 = jax.random.uniform(k2, (2,), jnp.float32, -bound1, bound1)
    w2 = jax.random.uniform(k3, (2, 1), jnp.float32, -bound2, bound2)
    b2 = jax.random.uniform(k4, (1,), jnp.float32, -bound2, bound2)
    return w1, b1, w2, b2


def pack_params(params):
    """Flatten all weights/biases into one (11,) f32 array (done ONCE, not per call)."""
    w1, b1, w2, b2 = params
    return jnp.concatenate([
        w1.astype(jnp.float32).reshape(-1),   # 6
        b1.astype(jnp.float32).reshape(-1),   # 2
        w2.astype(jnp.float32).reshape(-1),   # 2
        b2.astype(jnp.float32).reshape(-1),   # 1
    ])


def pack_input(x, *, lanes=512):
    """(N, 3) -> (3, R, LANES) zero-padded SoA feature-plane layout.

    Callers that can keep their data in this layout upstream should do so and
    call net_map_forward_packed directly: this transpose+pad is an extra HBM
    read+write pass that the kernel itself does not need.
    """
    n = x.shape[0]
    lanes = min(lanes, max(128, _round_up(n, 128)))
    n_pad = _round_up(n, 8 * lanes)
    xt = jnp.zeros((3, n_pad), jnp.float32).at[:, :n].set(x.astype(jnp.float32).T)
    return xt.reshape(3, n_pad // lanes, lanes)


def net_map_forward_packed(x_packed, packed_params, *, max_tile_rows=512):
    """x_packed: (3, R, LANES) f32 (R % 8 == 0, LANES % 128 == 0) -> (R, LANES)."""
    _, r, lanes = x_packed.shape
    assert r % 8 == 0 and lanes % 128 == 0

    # Row tile: large enough to amortize per-step overhead (TR*LANES ~ 256K
    # elements -> ~8 MiB double-buffered), but keep >= 2 grid steps when there
    # is enough work so v7x can shard the "parallel" axis across both TCs.
    tr = min(max_tile_rows, r)
    if r >= 16:
        tr = min(tr, _round_up(_cdiv(r, 2), 8))
    grid = (_cdiv(r, tr),)          # cdiv: awkward N never rounds up to a whole tile

    n_elems = r * lanes
    tile_elems = tr * lanes
    # Double-buffered (3 input + 1 output planes) * f32 + generous headroom;
    # well under the 64 MiB physical VMEM on v7x.
    vmem_bytes = min(32 * 1024 * 1024,
                     max(16 * 1024 * 1024, 2 * 4 * tile_elems * 4 + (8 << 20)))

    return pl.pallas_call(
        _net_map_kernel,
        out_shape=jax.ShapeDtypeStruct((r, lanes), jnp.float32),
        grid=grid,
        in_specs=[
            pl.BlockSpec(memory_space=pltpu.MemorySpace.SMEM),        # 11 scalars
            pl.BlockSpec((3, tr, lanes), lambda i: (0, i, 0)),        # x feature planes
        ],
        out_specs=pl.BlockSpec((tr, lanes), lambda i: (i, 0)),        # dense output tile
        compiler_params=pltpu.CompilerParams(
            dimension_semantics=("parallel",),                        # TC sharding on v7x
            vmem_limit_bytes=vmem_bytes,
        ),
        cost_estimate=pl.CostEstimate(
            flops=16 * n_elems,               # ~8 MACs per row
            transcendentals=4 * n_elems,      # exp + log1p for 2 hidden units/row
            bytes_accessed=16 * n_elems,      # read 3 + write 1 f32 per row
        ),
    )(packed_params, x_packed)


def _forward_jax_packed(x, packed_params):
    """Small-N fast path: XLA fuses this into a handful of VPU ops."""
    p = packed_params
    w1 = p[0:6].reshape(3, 2)
    b1 = p[6:8]
    w2 = p[8:10].reshape(2, 1)
    b2 = p[10:11]
    h = _softplus(x.astype(jnp.float32) @ w1 + b1)
    return h @ w2 + b2


def net_map_forward(x, packed_params, *, lanes=512, max_tile_rows=512,
                    min_pallas_n=8192, force_pallas=False):
    """x: (N, 3) -> (N, 1), semantics of Net_Map.forward."""
    n = x.shape[0]
    if n < min_pallas_n and not force_pallas:
        # Custom-call launch + pack/slice cost more than an 11-weight MLP here.
        return _forward_jax_packed(x, packed_params)
    x_packed = pack_input(x, lanes=lanes)
    out = net_map_forward_packed(x_packed, packed_params, max_tile_rows=max_tile_rows)
    # Row-major flatten matches the pack order; padded tail is sliced off.
    return out.reshape(-1)[:n].reshape(n, 1)


def _reference_forward(x, params):
    """Pure-JAX reference for correctness check."""
    w1, b1, w2, b2 = params
    h = x.astype(jnp.float32) @ w1 + b1
    h = jnp.where(h > 20.0, h, jnp.log1p(jnp.exp(jnp.minimum(h, 20.0))))
    return h @ w2 + b2


if __name__ == "__main__":
    key = jax.random.PRNGKey(0)
    k_param, k_x1, k_x2 = jax.random.split(key, 3)

    params = init_params(k_param)
    packed = pack_params(params)            # hoisted out of the forward path

    # Small batch consistent with the module (N=8, in_features=3); force the
    # Pallas path so the kernel itself is exercised and checked.
    x_small = jax.random.normal(k_x1, (8, 3), jnp.float32)
    y_small = jax.block_until_ready(net_map_forward(x_small, packed, force_pallas=True))
    y_small_ref = _reference_forward(x_small, params)
    assert y_small.shape == (8, 1), y_small.shape
    assert jnp.allclose(y_small, y_small_ref, atol=1e-5, rtol=1e-5), (y_small, y_small_ref)

    # Moderately sized batch to exercise the tiled, multi-step (grid >= 2) path.
    x_big = jax.random.normal(k_x2, (20000, 3), jnp.float32)
    y_big = jax.block_until_ready(net_map_forward(x_big, packed))
    y_big_ref = _reference_forward(x_big, params)
    assert y_big.shape == (20000, 1), y_big.shape
    assert jnp.allclose(y_big, y_big_ref, atol=1e-5, rtol=1e-5)

    print("KERNEL_OK")
</pallas_src>

<mosaic_0001>
module attributes {stable_mosaic.version = 11 : i64} {
  func.func @_net_map_kernel(%arg0: i32, %arg1: memref<11xf32, #tpu.memory_space<smem>>, %arg2: memref<3x8x128xf32, #tpu.memory_space<vmem>>, %arg3: memref<8x128xf32, #tpu.memory_space<vmem>>) attributes {dimension_semantics = [#tpu.dimension_semantics<parallel>], iteration_bounds = array<i64: 1>, scalar_prefetch = 0 : i64, scratch_operands = 0 : i64, tpu.core_type = #tpu.core_type<tc>, window_params = [{transform_indices = @transform_0, window_bounds = array<i64: 11>}, {transform_indices = @transform_1, window_bounds = array<i64: 3, 8, 128>}, {transform_indices = @transform_2, window_bounds = array<i64: 8, 128>}]} {
    %c0 = arith.constant 0 : index
    %c0_0 = arith.constant 0 : index
    %c0_1 = arith.constant 0 : index
    %0 = vector.load %arg2[%c0, %c0_0, %c0_1] : memref<3x8x128xf32, #tpu.memory_space<vmem>>, vector<1x8x128xf32>
    %1 = vector.shape_cast %0 : vector<1x8x128xf32> to vector<8x128xf32>
    %c1 = arith.constant 1 : index
    %c0_2 = arith.constant 0 : index
    %c0_3 = arith.constant 0 : index
    %2 = vector.load %arg2[%c1, %c0_2, %c0_3] : memref<3x8x128xf32, #tpu.memory_space<vmem>>, vector<1x8x128xf32>
    %3 = vector.shape_cast %2 : vector<1x8x128xf32> to vector<8x128xf32>
    %c2 = arith.constant 2 : index
    %c0_4 = arith.constant 0 : index
    %c0_5 = arith.constant 0 : index
    %4 = vector.load %arg2[%c2, %c0_4, %c0_5] : memref<3x8x128xf32, #tpu.memory_space<vmem>>, vector<1x8x128xf32>
    %5 = vector.shape_cast %4 : vector<1x8x128xf32> to vector<8x128xf32>
    %c0_6 = arith.constant 0 : index
    %6 = memref.load %arg1[%c0_6] : memref<11xf32, #tpu.memory_space<smem>>
    %c1_7 = arith.constant 1 : index
    %7 = memref.load %arg1[%c1_7] : memref<11xf32, #tpu.memory_space<smem>>
    %c2_8 = arith.constant 2 : index
    %8 = memref.load %arg1[%c2_8] : memref<11xf32, #tpu.memory_space<smem>>
    %c3 = arith.constant 3 : index
    %9 = memref.load %arg1[%c3] : memref<11xf32, #tpu.memory_space<smem>>
    %c4 = arith.constant 4 : index
    %10 = memref.load %arg1[%c4] : memref<11xf32, #tpu.memory_space<smem>>
    %c5 = arith.constant 5 : index
    %11 = memref.load %arg1[%c5] : memref<11xf32, #tpu.memory_space<smem>>
    %c6 = arith.constant 6 : index
    %12 = memref.load %arg1[%c6] : memref<11xf32, #tpu.memory_space<smem>>
    %c7 = arith.constant 7 : index
    %13 = memref.load %arg1[%c7] : memref<11xf32, #tpu.memory_space<smem>>
    %c8 = arith.constant 8 : index
    %14 = memref.load %arg1[%c8] : memref<11xf32, #tpu.memory_space<smem>>
    %c9 = arith.constant 9 : index
    %15 = memref.load %arg1[%c9] : memref<11xf32, #tpu.memory_space<smem>>
    %c10 = arith.constant 10 : index
    %16 = memref.load %arg1[%c10] : memref<11xf32, #tpu.memory_space<smem>>
    %17 = vector.broadcast %6 : f32 to vector<8x128xf32>
    %18 = arith.mulf %17, %1 : vector<8x128xf32>
    %19 = vector.broadcast %8 : f32 to vector<8x128xf32>
    %20 = arith.mulf %19, %3 : vector<8x128xf32>
    %21 = arith.addf %18, %20 : vector<8x128xf32>
    %22 = vector.broadcast %10 : f32 to vector<8x128xf32>
    %23 = arith.mulf %22, %5 : vector<8x128xf32>
    %24 = arith.addf %21, %23 : vector<8x128xf32>
    %25 = vector.broadcast %12 : f32 to vector<8x128xf32>
    %26 = arith.addf %24, %25 : vector<8x128xf32>
    %27 = vector.broadcast %7 : f32 to vector<8x128xf32>
    %28 = arith.mulf %27, %1 : vector<8x128xf32>
    %29 = vector.broadcast %9 : f32 to vector<8x128xf32>
    %30 = arith.mulf %29, %3 : vector<8x128xf32>
    %31 = arith.addf %28, %30 : vector<8x128xf32>
    %32 = vector.broadcast %11 : f32 to vector<8x128xf32>
    %33 = arith.mulf %32, %5 : vector<8x128xf32>
    %34 = arith.addf %31, %33 : vector<8x128xf32>
    %35 = vector.broadcast %13 : f32 to vector<8x128xf32>
    %36 = arith.addf %34, %35 : vector<8x128xf32>
    %cst = arith.constant 2.000000e+01 : f32
    %37 = vector.broadcast %cst : f32 to vector<8x128xf32>
    %38 = arith.cmpf ogt, %26, %37 : vector<8x128xf32>
    %cst_9 = arith.constant 2.000000e+01 : f32
    %39 = vector.broadcast %cst_9 : f32 to vector<8x128xf32>
    %40 = arith.minimumf %26, %39 : vector<8x128xf32>
    %41 = math.exp %40 : vector<8x128xf32>
    %42 = math.log1p %41 : vector<8x128xf32>
    %43 = arith.select %38, %26, %42 : vector<8x128xi1>, vector<8x128xf32>
    %cst_10 = arith.constant 2.000000e+01 : f32
    %44 = vector.broadcast %cst_10 : f32 to vector<8x128xf32>
    %45 = arith.cmpf ogt, %36, %44 : vector<8x128xf32>
    %cst_11 = arith.constant 2.000000e+01 : f32
    %46 = vector.broadcast %cst_11 : f32 to vector<8x128xf32>
    %47 = arith.minimumf %36, %46 : vector<8x128xf32>
    %48 = math.exp %47 : vector<8x128xf32>
    %49 = math.log1p %48 : vector<8x128xf32>
    %50 = arith.select %45, %36, %49 : vector<8x128xi1>, vector<8x128xf32>
    %51 = vector.broadcast %14 : f32 to vector<8x128xf32>
    %52 = arith.mulf %51, %43 : vector<8x128xf32>
    %53 = vector.broadcast %15 : f32 to vector<8x128xf32>
    %54 = arith.mulf %53, %50 : vector<8x128xf32>
    %55 = arith.addf %52, %54 : vector<8x128xf32>
    %56 = vector.broadcast %16 : f32 to vector<8x128xf32>
    %57 = arith.addf %55, %56 : vector<8x128xf32>
    %c0_12 = arith.constant 0 : index
    %c0_13 = arith.constant 0 : index
    %58 = vector.load %arg3[%c0_12, %c0_13] : memref<8x128xf32, #tpu.memory_space<vmem>>, vector<8x128xf32>
    tpu.vector_store %arg3[%c0_12, %c0_13], %57 {strides = array<i32>} : memref<8x128xf32, #tpu.memory_space<vmem>>, vector<8x128xf32>,
    return
  }
  func.func @transform_0(%arg0: i32) -> i32 {
    %c0_i32 = arith.constant 0 : i32
    %c0_i32_0 = arith.constant 0 : i32
    return %c0_i32 : i32
  }
  func.func @transform_1(%arg0: i32) -> (i32, i32, i32) {
    %c0_i32 = arith.constant 0 : i32
    %c0_i32_0 = arith.constant 0 : i32
    %c0_i32_1 = arith.constant 0 : i32
    return %c0_i32, %arg0, %c0_i32_0 : i32, i32, i32
  }
  func.func @transform_2(%arg0: i32) -> (i32, i32) {
    %c0_i32 = arith.constant 0 : i32
    %c0_i32_0 = arith.constant 0 : i32
    return %arg0, %c0_i32 : i32, i32
  }
}

</mosaic_0001>

<llo_original>
// kernel: tpu_custom_call.1
$region0: #{tpu_custom_call.1}
  #allocation0 [shape = 'u32[]', space=smem, size = 0x4, offset = 0x4, fixed_abs, tag = 'smem constant byte address 0x4 - core index']
  #allocation1 [shape = 'u32[144,128]{1,0:T(1,128)}', space=vmem, size = 0x12000, scoped, tag = 'internal scratch']
  %s0 = inlined_call_operand.hbm [shape: f32[11], index: 0, kind: input, shape index: {}]
  %s1 = inlined_call_operand.hbm [shape: f32[3,8,128], index: 1, kind: input, shape index: {}]
  %s2 = inlined_call_operand.hbm [shape: f32[8,128], index: 2, kind: output, shape index: {}]
  %s3 = sld [smem:[#allocation0]]
  $region26: #{tpu_custom_call.1} parent=0
    _
  %s5 = ssub.s32 1, %s3
  %s6 = scalar_select 0, %s5, %s3
  $region1: #{tpu_custom_call.1} parent=0
    #allocation2 [shape = 'u8[512]{0}', space=smem, size = 0x200, scoped, tag = 'input window, operand 0, single buffered']
    #allocation3 [shape = 's32[1]{0}', space=sflag, size = 0x4, scoped, tag = 'scoped memory for tpu_custom_call.1']
    #allocation4 [shape = 's32[1]{0}', space=sflag, size = 0x4, scoped, tag = 'scoped memory for tpu_custom_call.1']
    #allocation5 [shape = 's32[1]{0}', space=sflag, size = 0x4, scoped, tag = 'scoped memory for tpu_custom_call.1']
    #allocation6 [shape = 'u8[12288]{0}', space=vmem, size = 0x3000, scoped, tag = 'input window, operand 1, single buffered']
    #allocation7 [shape = 'u8[4096]{0}', space=vmem, size = 0x1000, scoped, tag = 'output window, operand 0, single buffered']
    %7 = vsyncpa [#allocation5], 0
    %8 = vsyncpa [#allocation3], 0
    %9 = vsyncpa [#allocation4], 0
    // Predicated region
    $region2: #{tpu_custom_call.1} parent=1 // pred_check
      _
    $region3: #{tpu_custom_call.1} parent=1 // pred_check_branch
      %11 = sbr.rel (0) target = $region5
    $region4: #{tpu_custom_call.1} parent=1 // pred_region
      %s13 = ssub.s32 16, 16
      %14 = vsyncadd [#allocation5], %s13
      %17 = dma.hbm_to_smem %s0, 16, [#allocation2], [#allocation5]
    $region5: #{tpu_custom_call.1} parent=1 // pred_fallthru
      _
    // Predicated region
    $region6: #{tpu_custom_call.1} parent=1 // pred_check
      _
    $region7: #{tpu_custom_call.1} parent=1 // pred_check_branch
      %19 = sbr.rel (0) target = $region9
    $region8: #{tpu_custom_call.1} parent=1 // pred_region
      %s21 = ssub.s32 384, 384
      %22 = vsyncadd [#allocation3], %s21
      %s23 = sshll.u32 [#allocation6], 4
      %s24 = int_to_ptr.vmem [resolvable:$true] %s23
      %29 = dma.hbm_to_vmem [thread:$0]  %s1, 384, %s24, [#allocation3], 128, 128, 8
    $region9: #{tpu_custom_call.1} parent=1 // pred_fallthru
      _
    // Predicated region
    $region10: #{tpu_custom_call.1} parent=1 // pred_check
      _
    $region11: #{tpu_custom_call.1} parent=1 // pred_check_branch
      %31 = sbr.rel (0) target = $region13
    $region12: #{tpu_custom_call.1} parent=1 // pred_region
      %32 = dma.done [#allocation5], 16
    $region13: #{tpu_custom_call.1} parent=1 // pred_fallthru
      _
    // Predicated region
    $region14: #{tpu_custom_call.1} parent=1 // pred_check
      _
    $region15: #{tpu_custom_call.1} parent=1 // pred_check_branch
      %34 = sbr.rel (0) target = $region17
    $region16: #{tpu_custom_call.1} parent=1 // pred_region
      %35 = dma.done [#allocation3], 384
    $region17: #{tpu_custom_call.1} parent=1 // pred_fallthru
      _
    %36 = sfence
    %v37 = vld [vmem:[#allocation6] sm:$0xff]
    %s38 = scalar_lea.vmem [#allocation6], 8
    %v39 = vld [vmem:[%s38] sm:$0xff]
    %s40 = scalar_lea.vmem [#allocation6], 16
    %v41 = vld [vmem:[%s40] sm:$0xff]
    %s42 = sld [smem:[#allocation2]]
    %s43 = sld [smem:[#allocation2 + $0x1]]
    %s44 = sld [smem:[#allocation2 + $0x2]]
    %s45 = sld [smem:[#allocation2 + $0x3]]
    %s46 = sld [smem:[#allocation2 + $0x4]]
    %s47 = sld [smem:[#allocation2 + $0x5]]
    %s48 = sld [smem:[#allocation2 + $0x6]]
    %s49 = sld [smem:[#allocation2 + $0x7]]
    %s50 = sld [smem:[#allocation2 + $0x8]]
    %s51 = sld [smem:[#allocation2 + $0x9]]
    %s52 = sld [smem:[#allocation2 + $0xa]]
    %v53 = vstv %s42
    %v54 = vmul.f32 %v53, %v37
    %v55 = vstv %s44
    %v56 = vmul.f32 %v55, %v39
    %v57 = vadd.f32 %v54, %v56
    %v58 = vstv %s46
    %v59 = vmul.f32 %v58, %v41
    %v60 = vadd.f32 %v57, %v59
    %v61 = vstv %s48
    %v62 = vadd.f32 %v60, %v61
    %v63 = vstv %s43
    %v64 = vmul.f32 %v63, %v37
    %v65 = vstv %s45
    %v66 = vmul.f32 %v65, %v39
    %v67 = vadd.f32 %v64, %v66
    %v68 = vstv %s47
    %v69 = vmul.f32 %v68, %v41
    %v70 = vadd.f32 %v67, %v69
    %v71 = vstv %s49
    %v72 = vadd.f32 %v70, %v71
    %vm73 = vcmp.gt.f32.partialorder %v62, 20.0
    %v74 = vmin.f32 %v62, 20.0
    %v75 = vmul.f32 %v74, 1.442695
    %v76 = vpow.pop %v75
    %v77 = vadd.f32 %v76, 1.0
    %v78 = vlog2.pop %v77
    %v79 = vmul.f32 %v78, 0.6931472
    %v80 = vmul.f32 -0.5, %v76
    %v81 = vadd.f32 %v80, 1.0
    %v82 = vmul.f32 %v81, %v76
    %v83 = vand.u32 2147483647, %v76
    %vm84 = vcmp.lt.f32.partialorder %v83, 0.0004427343
    %v85 = vsel %vm84, %v82, %v79
    %v86 = vsel %vm73, %v62, %v85
    %vm87 = vcmp.gt.f32.partialorder %v72, 20.0
    %v88 = vmin.f32 %v72, 20.0
    %v89 = vmul.f32 %v88, 1.442695
    %v90 = vpow.pop %v89
    %v91 = vadd.f32 %v90, 1.0
    %v92 = vlog2.pop %v91
    %v93 = vmul.f32 %v92, 0.6931472
    %v94 = vmul.f32 -0.5, %v90
    %v95 = vadd.f32 %v94, 1.0
    %v96 = vmul.f32 %v95, %v90
    %v97 = vand.u32 2147483647, %v90
    %vm98 = vcmp.lt.f32.partialorder %v97, 0.0004427343
    %v99 = vsel %vm98, %v96, %v93
    %v100 = vsel %vm87, %v72, %v99
    %v101 = vstv %s50
    %v102 = vmul.f32 %v101, %v86
    %v103 = vstv %s51
    %v104 = vmul.f32 %v103, %v100
    %v105 = vadd.f32 %v102, %v104
    %v106 = vstv %s52
    %v107 = vadd.f32 %v105, %v106
    %108 = vst [vmem:[#allocation7] sm:$0xff] %v107
    // Predicated region
    $region18: #{tpu_custom_call.1} parent=1 // pred_check
      _
    $region19: #{tpu_custom_call.1} parent=1 // pred_check_branch
      %110 = sbr.rel (0) target = $region21
    $region20: #{tpu_custom_call.1} parent=1 // pred_region
      %s112 = ssub.s32 128, 128
      %113 = vsyncadd [#allocation4], %s112
      %s115 = sshll.u32 [#allocation7], 4
      %s116 = int_to_ptr.vmem [resolvable:$true] %s115
      %118 = dma.vmem_to_hbm [thread:$0]  %s116, 128, %s2, [#allocation4]
    $region21: #{tpu_custom_call.1} parent=1 // pred_fallthru
      _
    // Predicated region
    $region22: #{tpu_custom_call.1} parent=1 // pred_check
      _
    $region23: #{tpu_custom_call.1} parent=1 // pred_check_branch
      %120 = sbr.rel (0) target = $region25
    $region24: #{tpu_custom_call.1} parent=1 // pred_region
      %121 = dma.done [#allocation4], 128
    $region25: #{tpu_custom_call.1} parent=1 // pred_fallthru
      _
    %122 = vsyncpa [#allocation3], 1
    %123 = vsyncpa [#allocation4], 1
    %124 = vsyncpa [#allocation5], 1

</llo_original>
